<compile_context>
chip_gen: v6e
topology: v6e:2x2x1
jax: 0.10.0
libtpu: 0.0.40
codegen_flags: <defaults>
</compile_context>

<pallas_src>
import jax
import jax.numpy as jnp
from jax.experimental import pallas as pl
from jax.experimental.pallas import tpu as pltpu

HIDDEN = 200       # logical hidden size (matches the PyTorch module)
H_PAD = 256        # padded hidden size (2 x 128 lanes, one 256-wide MXU tile)
TILE_B_MAX = 512   # largest batch tile per grid step
LANE = 128


def _pick_tile_b(batch):
    """Batch tile: multiple of 128 (lane-dense output blocks, aligned x
    sublanes), capped at TILE_B_MAX, and sized so that medium/large batches
    produce >= 2 grid steps (lets v7x's two TensorCores both get a tile)."""
    half = -(-batch // 2)                       # cdiv(batch, 2)
    t = -(-half // LANE) * LANE                 # round up to a multiple of 128
    return max(LANE, min(TILE_B_MAX, t))


def _mlp_kernel(x_ref, w1_ref, b1_ref, w2_ref, b2_ref, w3_ref, b3_ref, o_ref):
    # x tile: (TILE_B, D) f32 -> bf16 for the MXU.
    x = x_ref[...].astype(jnp.bfloat16)

    # fc1 (MXU, bf16 in / f32 acc) + bias + ReLU in f32.
    h1 = jnp.dot(x, w1_ref[...], preferred_element_type=jnp.float32)
    h1 = jnp.maximum(h1 + b1_ref[...], 0.0)                        # (TILE_B, 256)

    # fc2 (MXU) + bias + ReLU.
    h2 = jnp.dot(h1.astype(jnp.bfloat16), w2_ref[...],
                 preferred_element_type=jnp.float32)
    h2 = jnp.maximum(h2 + b2_ref[...], 0.0)                        # (TILE_B, 256)

    # fc3: contract w3 (1, 256) with h2 (TILE_B, 256) along the hidden dim so
    # the result is already a lane-major (1, TILE_B) row (f32, no relayout).
    logits = jax.lax.dot_general(
        w3_ref[...], h2,
        dimension_numbers=(((1,), (1,)), ((), ())),
        preferred_element_type=jnp.float32)                        # (1, TILE_B)

    # Bias + sigmoid (EUP), stored as the lane-dense output row.
    o_ref[...] = jax.nn.sigmoid(logits + b3_ref[...])              # (1, TILE_B)


@jax.jit
def net_forward(x, prepared_params):
    """x: (B, input_size) float32. Returns (B,) float32 sigmoid probabilities."""
    w1p, b1p, w2p, b2p, w3p, b3 = prepared_params
    B, D = x.shape

    tile_b = _pick_tile_b(B)
    nb = pl.cdiv(B, tile_b)
    b_pad = nb * tile_b

    flops = 2 * b_pad * (D * H_PAD + H_PAD * H_PAD + H_PAD)
    bytes_accessed = (B * D * 4                          # x (f32, no pad copy)
                      + (D * H_PAD + H_PAD * H_PAD) * 2  # bf16 weights
                      + (3 * H_PAD + 1) * 4              # f32 biases + w3 row
                      + b_pad * 4)                       # lane-major output row
    cost = pl.CostEstimate(flops=flops, transcendentals=b_pad,
                           bytes_accessed=bytes_accessed)

    out = pl.pallas_call(
        _mlp_kernel,
        out_shape=jax.ShapeDtypeStruct((1, b_pad), jnp.float32),
        grid=(nb,),
        in_specs=[
            pl.BlockSpec((tile_b, D), lambda i: (i, 0)),     # x: pipelined tile
            pl.BlockSpec((D, H_PAD), lambda i: (0, 0)),      # w1: resident
            pl.BlockSpec((1, H_PAD), lambda i: (0, 0)),      # b1: resident
            pl.BlockSpec((H_PAD, H_PAD), lambda i: (0, 0)),  # w2: resident
            pl.BlockSpec((1, H_PAD), lambda i: (0, 0)),      # b2: resident
            pl.BlockSpec((1, H_PAD), lambda i: (0, 0)),      # w3 row: resident
            pl.BlockSpec((1, 1), lambda i: (0, 0)),          # b3: resident
        ],
        out_specs=pl.BlockSpec((1, tile_b), lambda i: (0, i)),
        compiler_params=pltpu.CompilerParams(
            dimension_semantics=("parallel",)),
        cost_estimate=cost,
    )(x, w1p, b1p, w2p, b2p, w3p, b3)

    # squeeze(dim=-1): single contiguous probability row; columns >= B came
    # from clipped/garbage tail rows and are discarded (all ops are
    # row-independent, so they never contaminate valid rows).
    return out[0, :B]


def init_params(key, input_size):
    """Deterministic init mimicking nn.Linear's U(-1/sqrt(fan_in), 1/sqrt(fan_in)).
    Weights stored as (in_features, out_features); biases as (1, out_features)."""
    def linear(key, fan_in, fan_out):
        kw, kb = jax.random.split(key)
        bound = 1.0 / jnp.sqrt(fan_in)
        w = jax.random.uniform(kw, (fan_in, fan_out), jnp.float32, -bound, bound)
        b = jax.random.uniform(kb, (1, fan_out), jnp.float32, -bound, bound)
        return w, b

    k1, k2, k3 = jax.random.split(key, 3)
    w1, b1 = linear(k1, input_size, HIDDEN)
    w2, b2 = linear(k2, HIDDEN, HIDDEN)
    w3, b3 = linear(k3, HIDDEN, 1)
    return (w1, b1, w2, b2, w3, b3)


def pad_and_cast_params(params):
    """Zero-pad hidden dim 200 -> 256 and cast matmul weights to bf16.

    Done once outside the forward pass so weights are not re-padded per call.
    Zero padding is numerically exact through bias+ReLU (padded lanes stay 0,
    padded w2 rows / w3 entries are 0)."""
    w1, b1, w2, b2, w3, b3 = params
    D = w1.shape[0]
    w1p = jnp.zeros((D, H_PAD), jnp.float32).at[:, :HIDDEN].set(w1)
    w2p = jnp.zeros((H_PAD, H_PAD), jnp.float32).at[:HIDDEN, :HIDDEN].set(w2)
    b1p = jnp.zeros((1, H_PAD), jnp.float32).at[:, :HIDDEN].set(b1)
    b2p = jnp.zeros((1, H_PAD), jnp.float32).at[:, :HIDDEN].set(b2)
    w3p = jnp.zeros((1, H_PAD), jnp.float32).at[:, :HIDDEN].set(w3[:, 0])
    return (w1p.astype(jnp.bfloat16), b1p,
            w2p.astype(jnp.bfloat16), b2p,
            w3p, b3)


if __name__ == "__main__":
    key = jax.random.PRNGKey(0)
    k_params, k_x, k_x2 = jax.random.split(key, 3)

    input_size = 32
    params = init_params(k_params, input_size)
    prepared = pad_and_cast_params(params)

    def reference(x, params):
        w1, b1, w2, b2, w3, b3 = params
        h = jnp.maximum(x @ w1 + b1, 0.0)
        h = jnp.maximum(h @ w2 + b2, 0.0)
        return jax.nn.sigmoid((h @ w3 + b3)[:, 0])

    # Small batch (single grid step; partial x block handled by Pallas clipping).
    batch = 8
    x = jax.random.normal(k_x, (batch, input_size), jnp.float32)
    y = net_forward(x, prepared)
    jax.block_until_ready(y)
    assert y.shape == (batch,), y.shape
    assert jnp.allclose(y, reference(x, params), atol=2e-2), "small-batch mismatch"

    # Larger batch exercising the multi-tile grid (2 tiles, ragged tail).
    batch2 = 300
    x2 = jax.random.normal(k_x2, (batch2, input_size), jnp.float32)
    y2 = net_forward(x2, prepared)
    jax.block_until_ready(y2)
    assert y2.shape == (batch2,), y2.shape
    assert jnp.allclose(y2, reference(x2, params), atol=2e-2), "multi-tile mismatch"

    print("KERNEL_OK")
</pallas_src>

<mosaic_0001>
module attributes {stable_mosaic.version = 11 : i64} {
  func.func @_mlp_kernel(%arg0: i32, %arg1: memref<128x32xf32, #tpu.memory_space<vmem>>, %arg2: memref<32x256xbf16, #tpu.memory_space<vmem>>, %arg3: memref<1x256xf32, #tpu.memory_space<vmem>>, %arg4: memref<256x256xbf16, #tpu.memory_space<vmem>>, %arg5: memref<1x256xf32, #tpu.memory_space<vmem>>, %arg6: memref<1x256xf32, #tpu.memory_space<vmem>>, %arg7: memref<1x1xf32, #tpu.memory_space<vmem>>, %arg8: memref<1x128xf32, #tpu.memory_space<vmem>>) attributes {dimension_semantics = [#tpu.dimension_semantics<parallel>], iteration_bounds = array<i64: 1>, scalar_prefetch = 0 : i64, scratch_operands = 0 : i64, tpu.core_type = #tpu.core_type<tc>, window_params = [{transform_indices = @transform_0, window_bounds = array<i64: 128, 32>}, {pipeline_mode = #tpu.pipeline_mode<synchronous>, transform_indices = @transform_1, window_bounds = array<i64: 32, 256>}, {pipeline_mode = #tpu.pipeline_mode<synchronous>, transform_indices = @transform_2, window_bounds = array<i64: 1, 256>}, {pipeline_mode = #tpu.pipeline_mode<synchronous>, transform_indices = @transform_3, window_bounds = array<i64: 256, 256>}, {pipeline_mode = #tpu.pipeline_mode<synchronous>, transform_indices = @transform_4, window_bounds = array<i64: 1, 256>}, {pipeline_mode = #tpu.pipeline_mode<synchronous>, transform_indices = @transform_5, window_bounds = array<i64: 1, 256>}, {pipeline_mode = #tpu.pipeline_mode<synchronous>, transform_indices = @transform_6, window_bounds = array<i64: 1, 1>}, {transform_indices = @transform_7, window_bounds = array<i64: 1, 128>}]} {
    %c0 = arith.constant 0 : index
    %c0_0 = arith.constant 0 : index
    %0 = vector.load %arg1[%c0, %c0_0] : memref<128x32xf32, #tpu.memory_space<vmem>>, vector<128x32xf32>
    %1 = arith.truncf %0 : vector<128x32xf32> to vector<128x32xbf16>
    %c0_1 = arith.constant 0 : index
    %c0_2 = arith.constant 0 : index
    %2 = vector.load %arg2[%c0_1, %c0_2] : memref<32x256xbf16, #tpu.memory_space<vmem>>, vector<32x256xbf16>
    %cst = arith.constant dense<0.000000e+00> : vector<128x256xf32>
    %3 = tpu.matmul %1, %2, %cst {dimension_numbers = #tpu.dot_dimension_numbers<[1], [0], [0], [1], [0, 0, 1, 1], [], []>} : vector<128x32xbf16>, vector<32x256xbf16>, vector<128x256xf32> -> vector<128x256xf32>
    %c0_3 = arith.constant 0 : index
    %c0_4 = arith.constant 0 : index
    %4 = vector.load %arg3[%c0_3, %c0_4] : memref<1x256xf32, #tpu.memory_space<vmem>>, vector<1x256xf32>
    %5 = vector.broadcast %4 : vector<1x256xf32> to vector<128x256xf32>
    %6 = arith.addf %3, %5 : vector<128x256xf32>
    %cst_5 = arith.constant 0.000000e+00 : f32
    %7 = vector.broadcast %cst_5 : f32 to vector<128x256xf32>
    %8 = arith.maximumf %6, %7 : vector<128x256xf32>
    %9 = arith.truncf %8 : vector<128x256xf32> to vector<128x256xbf16>
    %c0_6 = arith.constant 0 : index
    %c0_7 = arith.constant 0 : index
    %10 = vector.load %arg4[%c0_6, %c0_7] : memref<256x256xbf16, #tpu.memory_space<vmem>>, vector<256x256xbf16>
    %cst_8 = arith.constant dense<0.000000e+00> : vector<128x256xf32>
    %11 = tpu.matmul %9, %10, %cst_8 {dimension_numbers = #tpu.dot_dimension_numbers<[1], [0], [0], [1], [0, 0, 1, 1], [], []>} : vector<128x256xbf16>, vector<256x256xbf16>, vector<128x256xf32> -> vector<128x256xf32>
    %c0_9 = arith.constant 0 : index
    %c0_10 = arith.constant 0 : index
    %12 = vector.load %arg5[%c0_9, %c0_10] : memref<1x256xf32, #tpu.memory_space<vmem>>, vector<1x256xf32>
    %13 = vector.broadcast %12 : vector<1x256xf32> to vector<128x256xf32>
    %14 = arith.addf %11, %13 : vector<128x256xf32>
    %cst_11 = arith.constant 0.000000e+00 : f32
    %15 = vector.broadcast %cst_11 : f32 to vector<128x256xf32>
    %16 = arith.maximumf %14, %15 : vector<128x256xf32>
    %c0_12 = arith.constant 0 : index
    %c0_13 = arith.constant 0 : index
    %17 = vector.load %arg6[%c0_12, %c0_13] : memref<1x256xf32, #tpu.memory_space<vmem>>, vector<1x256xf32>
    %cst_14 = arith.constant dense<0.000000e+00> : vector<1x128xf32>
    %18 = tpu.matmul %17, %16, %cst_14 {dimension_numbers = #tpu.dot_dimension_numbers<[1], [1], [0], [0], [0, 0, 1, 0], [], []>} : vector<1x256xf32>, vector<128x256xf32>, vector<1x128xf32> -> vector<1x128xf32>
    %c0_15 = arith.constant 0 : index
    %c0_16 = arith.constant 0 : index
    %19 = vector.load %arg7[%c0_15, %c0_16] : memref<1x1xf32, #tpu.memory_space<vmem>>, vector<1x1xf32>
    %20 = vector.broadcast %19 : vector<1x1xf32> to vector<1x128xf32>
    %21 = arith.addf %18, %20 : vector<1x128xf32>
    %22 = arith.negf %21 : vector<1x128xf32>
    %23 = math.exp %22 : vector<1x128xf32>
    %cst_17 = arith.constant 1.000000e+00 : f32
    %24 = vector.broadcast %cst_17 : f32 to vector<1x128xf32>
    %25 = arith.addf %24, %23 : vector<1x128xf32>
    %26 = arith.divf %24, %25 : vector<1x128xf32>
    %c0_18 = arith.constant 0 : index
    %c0_19 = arith.constant 0 : index
    %27 = vector.load %arg8[%c0_18, %c0_19] : memref<1x128xf32, #tpu.memory_space<vmem>>, vector<1x128xf32>
    tpu.vector_store %arg8[%c0_18, %c0_19], %26 {strides = array<i32>} : memref<1x128xf32, #tpu.memory_space<vmem>>, vector<1x128xf32>,
    return
  }
  func.func @transform_0(%arg0: i32) -> (i32, i32) {
    %c0_i32 = arith.constant 0 : i32
    %c0_i32_0 = arith.constant 0 : i32
    return %arg0, %c0_i32 : i32, i32
  }
  func.func @transform_1(%arg0: i32) -> (i32, i32) {
    %c0_i32 = arith.constant 0 : i32
    %c0_i32_0 = arith.constant 0 : i32
    %c0_i32_1 = arith.constant 0 : i32
    return %c0_i32, %c0_i32_0 : i32, i32
  }
  func.func @transform_2(%arg0: i32) -> (i32, i32) {
    %c0_i32 = arith.constant 0 : i32
    %c0_i32_0 = arith.constant 0 : i32
    %c0_i32_1 = arith.constant 0 : i32
    return %c0_i32, %c0_i32_0 : i32, i32
  }
  func.func @transform_3(%arg0: i32) -> (i32, i32) {
    %c0_i32 = arith.constant 0 : i32
    %c0_i32_0 = arith.constant 0 : i32
    %c0_i32_1 = arith.constant 0 : i32
    return %c0_i32, %c0_i32_0 : i32, i32
  }
  func.func @transform_4(%arg0: i32) -> (i32, i32) {
    %c0_i32 = arith.constant 0 : i32
    %c0_i32_0 = arith.constant 0 : i32
    %c0_i32_1 = arith.constant 0 : i32
    return %c0_i32, %c0_i32_0 : i32, i32
  }
  func.func @transform_5(%arg0: i32) -> (i32, i32) {
    %c0_i32 = arith.constant 0 : i32
    %c0_i32_0 = arith.constant 0 : i32
    %c0_i32_1 = arith.constant 0 : i32
    return %c0_i32, %c0_i32_0 : i32, i32
  }
  func.func @transform_6(%arg0: i32) -> (i32, i32) {
    %c0_i32 = arith.constant 0 : i32
    %c0_i32_0 = arith.constant 0 : i32
    %c0_i32_1 = arith.constant 0 : i32
    return %c0_i32, %c0_i32_0 : i32, i32
  }
  func.func @transform_7(%arg0: i32) -> (i32, i32) {
    %c0_i32 = arith.constant 0 : i32
    %c0_i32_0 = arith.constant 0 : i32
    return %c0_i32, %arg0 : i32, i32
  }
}

</mosaic_0001>

<llo_original>
// kernel: net_forward.1
$region0: #{net_forward.1}
  #allocation0 [shape = 'u32[]', space=smem, size = 0x4, offset = 0x4, fixed_abs, tag = 'smem constant byte address 0x4 - core index']
  #allocation1 [shape = 'u32[144,128]{1,0:T(1,128)}', space=vmem, size = 0x12000, scoped, tag = 'internal scratch']
  #allocation2 [shape = 'f32[1,1]{1,0:T(1,128)S(1)}', space=vmem, size = 0x200, scoped, tag = 'scoped memory for net_forward.1']
  %s0 = inlined_call_operand.hbm [shape: f32[8,32], index: 0, kind: input, shape index: {}]
  %s1 = inlined_call_operand.hbm [shape: bf16[32,256], index: 1, kind: input, shape index: {}]
  %s2 = inlined_call_operand.vmem [shape: f32[1,256], index: 2, kind: input, shape index: {}]
  %s3 = inlined_call_operand.hbm [shape: bf16[256,256], index: 3, kind: input, shape index: {}]
  %s4 = inlined_call_operand.vmem [shape: f32[1,256], index: 4, kind: input, shape index: {}]
  %s5 = inlined_call_operand.vmem [shape: f32[1,256], index: 5, kind: input, shape index: {}]
  %s6 = inlined_call_operand.<no memory space> [shape: f32[1,1], index: 6, kind: input, shape index: {}]
  %s7 = inlined_call_operand.vmem [shape: f32[1,128], index: 7, kind: output, shape index: {}]
  %s8 = sld [smem:[#allocation0]]
  $region50: #{net_forward.1} parent=0
    _
  %s10 = ssub.s32 1, %s8
  %s11 = scalar_select 0, %s10, %s8
  %v12 = vstv %s6
  %13 = vst [vmem:[#allocation2] sm:$0x1] %v12
  $region1: #{net_forward.1} parent=0
    #allocation3 [shape = 'u8[65536]{0}', space=vmem, size = 0x10000, scoped, tag = 'input window, operand 0, single buffered']
    #allocation4 [shape = 's32[1]{0}', space=sflag, size = 0x4, scoped, tag = 'scoped memory for net_forward.1']
    #allocation5 [shape = 'u8[16384]{0}', space=vmem, size = 0x4000, scoped, tag = 'input window, operand 1, single buffered']
    #allocation6 [shape = 's32[1]{0}', space=sflag, size = 0x4, scoped, tag = 'scoped memory for net_forward.1']
    #allocation7 [shape = 'u8[131072]{0}', space=vmem, size = 0x20000, scoped, tag = 'input window, operand 3, single buffered']
    %14 = vsyncpa [#allocation4], 0
    %15 = vsyncpa [#allocation6], 0
    // Predicated region
    $region2: #{net_forward.1} parent=1 // pred_check
      _
    $region3: #{net_forward.1} parent=1 // pred_check_branch
      %17 = sbr.rel (0) target = $region5
    $region4: #{net_forward.1} parent=1 // pred_region
      %s19 = ssub.s32 2048, 128
      %20 = vsyncadd [#allocation4], %s19
      %s21 = sshll.u32 [#allocation3], 4
      %s22 = int_to_ptr.vmem [resolvable:$true] %s21
      %27 = dma.hbm_to_vmem [thread:$0]  %s0, 128, %s22, [#allocation4], 128, 128, 8
    $region5: #{net_forward.1} parent=1 // pred_fallthru
      _
    // Predicated region
    $region6: #{net_forward.1} parent=1 // pred_check
      _
    $region7: #{net_forward.1} parent=1 // pred_check_branch
      %29 = sbr.rel (0) target = $region9
    $region8: #{net_forward.1} parent=1 // pred_region
      %s31 = ssub.s32 512, 512
      %32 = vsyncadd [#allocation6], %s31
      %s33 = sshll.u32 [#allocation5], 4
      %s34 = int_to_ptr.vmem [resolvable:$true] %s33
      %39 = dma.hbm_to_vmem [thread:$0]  %s1, 512, %s34, [#allocation6], 128, 128, 8
    $region9: #{net_forward.1} parent=1 // pred_fallthru
      _
    // Predicated region
    $region10: #{net_forward.1} parent=1 // pred_check
      _
    $region11: #{net_forward.1} parent=1 // pred_check_branch
      %41 = sbr.rel (0) target = $region13
    $region12: #{net_forward.1} parent=1 // pred_region
      _
    $region13: #{net_forward.1} parent=1 // pred_fallthru
      _
    // Predicated region
    $region14: #{net_forward.1} parent=1 // pred_check
      _
    $region15: #{net_forward.1} parent=1 // pred_check_branch
      %43 = sbr.rel (0) target = $region17
    $region16: #{net_forward.1} parent=1 // pred_region
      %s45 = ssub.s32 4096, 4096
      %46 = vsyncadd [#allocation6], %s45
      %s47 = sshll.u32 [#allocation7], 4
      %s48 = int_to_ptr.vmem [resolvable:$true] %s47
      %53 = dma.hbm_to_vmem [thread:$0]  %s3, 4096, %s48, [#allocation6], 128, 128, 8
    $region17: #{net_forward.1} parent=1 // pred_fallthru
      _
    // Predicated region
    $region18: #{net_forward.1} parent=1 // pred_check
      _
    $region19: #{net_forward.1} parent=1 // pred_check_branch
      %55 = sbr.rel (0) target = $region21
    $region20: #{net_forward.1} parent=1 // pred_region
      _
    $region21: #{net_forward.1} parent=1 // pred_fallthru
      _
    // Predicated region
    $region22: #{net_forward.1} parent=1 // pred_check
      _
    $region23: #{net_forward.1} parent=1 // pred_check_branch
      %57 = sbr.rel (0) target = $region25
    $region24: #{net_forward.1} parent=1 // pred_region
      _
    $region25: #{net_forward.1} parent=1 // pred_fallthru
      _
    // Predicated region
    $region26: #{net_forward.1} parent=1 // pred_check
      _
    $region27: #{net_forward.1} parent=1 // pred_check_branch
      %59 = sbr.rel (0) target = $region29
    $region28: #{net_forward.1} parent=1 // pred_region
      _
    $region29: #{net_forward.1} parent=1 // pred_fallthru
      _
    // Predicated region
    $region30: #{net_forward.1} parent=1 // pred_check
      _
    $region31: #{net_forward.1} parent=1 // pred_check_branch
      %61 = sbr.rel (0) target = $region33
    $region32: #{net_forward.1} parent=1 // pred_region
      %62 = dma.done [#allocation4], 2048
    $region33: #{net_forward.1} parent=1 // pred_fallthru
      _
    // Predicated region
    $region34: #{net_forward.1} parent=1 // pred_check
      _
    $region35: #{net_forward.1} parent=1 // pred_check_branch
      %64 = sbr.rel (0) target = $region37
    $region36: #{net_forward.1} parent=1 // pred_region
      %65 = dma.done [#allocation6], 512
    $region37: #{net_forward.1} parent=1 // pred_fallthru
      _
    // Predicated region
    $region38: #{net_forward.1} parent=1 // pred_check
      _
    $region39: #{net_forward.1} parent=1 // pred_check_branch
      %67 = sbr.rel (0) target = $region41
    $region40: #{net_forward.1} parent=1 // pred_region
      %68 = dma.done [#allocation6], 4096
    $region41: #{net_forward.1} parent=1 // pred_fallthru
      _
    %v70 = vld [vmem:[#allocation3] sm:$0xff]
    %v71 = vld [vmem:[#allocation3 + $0x8] sm:$0xff]
    %v72 = vld [vmem:[#allocation3 + $0x10] sm:$0xff]
    %v73 = vld [vmem:[#allocation3 + $0x18] sm:$0xff]
    %v74 = vld [vmem:[#allocation3 + $0x20] sm:$0xff]
    %v75 = vld [vmem:[#allocation3 + $0x28] sm:$0xff]
    %v76 = vld [vmem:[#allocation3 + $0x30] sm:$0xff]
    %v77 = vld [vmem:[#allocation3 + $0x38] sm:$0xff]
    %v78 = vld [vmem:[#allocation3 + $0x40] sm:$0xff]
    %v79 = vld [vmem:[#allocation3 + $0x48] sm:$0xff]
    %v80 = vld [vmem:[#allocation3 + $0x50] sm:$0xff]
    %v81 = vld [vmem:[#allocation3 + $0x58] sm:$0xff]
    %v82 = vld [vmem:[#allocation3 + $0x60] sm:$0xff]
    %v83 = vld [vmem:[#allocation3 + $0x68] sm:$0xff]
    %v84 = vld [vmem:[#allocation3 + $0x70] sm:$0xff]
    %v85 = vld [vmem:[#allocation3 + $0x78] sm:$0xff]
    %v86 = vpack.c.bf16 %v71, %v70
    %v87 = vpack.c.bf16 %v73, %v72
    %v88 = vpack.c.bf16 %v75, %v74
    %v89 = vpack.c.bf16 %v77, %v76
    %v90 = vpack.c.bf16 %v79, %v78
    %v91 = vpack.c.bf16 %v81, %v80
    %v92 = vpack.c.bf16 %v83, %v82
    %v93 = vpack.c.bf16 %v85, %v84
    %v94 = vld [vmem:[#allocation5] sm:$0xff]
    %v95 = vld [vmem:[#allocation5 + $0x8] sm:$0xff]
    %v96 = vld [vmem:[#allocation5 + $0x10] sm:$0xff]
    %v97 = vld [vmem:[#allocation5 + $0x18] sm:$0xff]
    %v98 = vld [vmem:[%s2] sm:$0x3]
    %v100 = vlaneseq
    %v101 = vshrl.u32 %v100, 7
    %v102 = vsub.s32 0, %v101
    %v103 = vrot.slane %v98, %v102
    %v104 = vlaneseq
    %v105 = vshrl.u32 %v104, 7
    %v106 = vsub.s32 1, %v105
    %v107 = vrot.slane %v98, %v106
    %v114 = vunpack.c.l.b16 %v94
    %v115 = vunpack.c.h.b16 %v94
    %v116 = vunpack.c.l.b16 %v95
    %v117 = vunpack.c.h.b16 %v95
    %v118 = vunpack.c.l.b16 %v96
    %v119 = vunpack.c.h.b16 %v96
    %v120 = vunpack.c.l.b16 %v97
    %v121 = vunpack.c.h.b16 %v97
    %v122 = vpack.c.b16 %v116, %v114
    %v123 = vpack.c.b16 %v117, %v115
    %v124 = vpack.c.b16 %v120, %v118
    %v125 = vpack.c.b16 %v121, %v119
    %vm130 = vcmask 261120
    %v132 = vsel %vm130, %v86, 0
    %v135 = vsel %vm130, %v87, 0
    %v138 = vsel %vm130, %v88, 0
    %v141 = vsel %vm130, %v89, 0
    %v144 = vsel %vm130, %v90, 0
    %v147 = vsel %vm130, %v91, 0
    %v150 = vsel %vm130, %v92, 0
    %v153 = vsel %vm130, %v93, 0
    %155 = vmatprep.subr.bf16.mxu0 0
    %156 = vmatpush1.bf16.msra.mxu0 0
    %157 = vmatprep.subr.bf16.mxu0 0
    %158 = vmatpush1.bf16.msra.mxu0 0
    %159 = vmatprep.subr.bf16.mxu0 0
    %160 = vmatpush1.bf16.msra.mxu0 0
    %161 = vmatprep.subr.bf16.mxu0 0
    %162 = vmatpush1.bf16.msra.mxu0 0
    %163 = vmatprep.subr.bf16.mxu0 0
    %164 = vmatpush1.bf16.msra.mxu0 0
    %165 = vmatprep.subr.bf16.mxu0 0
    %166 = vmatpush1.bf16.msra.mxu0 0
    %167 = vmatprep.subr.bf16.mxu0 %v125
    %168 = vmatpush1.bf16.msra.mxu0 %v124
    %169 = vmatprep.subr.bf16.mxu0 %v123
    %170 = vmatpush1.bf16.msra.mxu0 %v122
    %171 = vmatprep.subr.bf16.mxu0 0
    %172 = vmatpush2.bf16.msra.mxu0 0
    %173 = vmatprep.subr.bf16.mxu0 0
    %174 = vmatpush2.bf16.msra.mxu0 0
    %175 = vmatprep.subr.bf16.mxu0 0
    %176 = vmatpush2.bf16.msra.mxu0 0
    %177 = vmatprep.subr.bf16.mxu0 0
    %178 = vmatpush2.bf16.msra.mxu0 0
    %179 = vmatprep.subr.bf16.mxu0 0
    %180 = vmatpush2.bf16.msra.mxu0 0
    %181 = vmatprep.subr.bf16.mxu0 0
    %182 = vmatpush2.bf16.msra.mxu0 0
    %183 = vmatprep.subr.bf16.mxu0 0
    %184 = vmatpush2.bf16.msra.mxu0 0
    %185 = vmatprep.subr.bf16.mxu0 0
    %186 = vmatpush2.bf16.msra.mxu0 0
    %187 = vmatprep.mubr.bf16.mxu0 0
    %188 = vmatmul.mubr.bf16.gmra.mxu0 %v132
    %v189 = vpop.f32.mrf.mxu0
    %v190 = vadd.f32 %v103, %v189
    %v191 = vpop.f32.mrf.mxu0
    %v192 = vadd.f32 %v107, %v191
    %v193 = vpop.f32.mrf.mxu0
    %v194 = vadd.f32 %v103, %v193
    %v195 = vpop.f32.mrf.mxu0
    %v196 = vadd.f32 %v107, %v195
    %197 = vmatprep.mubr.bf16.mxu0 0
    %198 = vmatmul.mubr.bf16.gmra.mxu0 %v135
    %v199 = vpop.f32.mrf.mxu0
    %v200 = vadd.f32 %v103, %v199
    %v201 = vpop.f32.mrf.mxu0
    %v202 = vadd.f32 %v107, %v201
    %v203 = vpop.f32.mrf.mxu0
    %v204 = vadd.f32 %v103, %v203
    %v205 = vpop.f32.mrf.mxu0
    %v206 = vadd.f32 %v107, %v205
    %207 = vmatprep.mubr.bf16.mxu0 0
    %208 = vmatmul.mubr.bf16.gmra.mxu0 %v138
    %v209 = vpop.f32.mrf.mxu0
    %v210 = vadd.f32 %v103, %v209
    %v211 = vpop.f32.mrf.mxu0
    %v212 = vadd.f32 %v107, %v211
    %v213 = vpop.f32.mrf.mxu0
    %v214 = vadd.f32 %v103, %v213
    %v215 = vpop.f32.mrf.mxu0
    %v216 = vadd.f32 %v107, %v215
    %217 = vmatprep.mubr.bf16.mxu0 0
    %218 = vmatmul.mubr.bf16.gmra.mxu0 %v141
    %v219 = vpop.f32.mrf.mxu0
    %v220 = vadd.f32 %v103, %v219
    %v221 = vpop.f32.mrf.mxu0
    %v222 = vadd.f32 %v107, %v221
    %v223 = vpop.f32.mrf.mxu0
    %v224 = vadd.f32 %v103, %v223
    %v225 = vpop.f32.mrf.mxu0
    %v226 = vadd.f32 %v107, %v225
    %227 = vmatprep.mubr.bf16.mxu0 0
    %228 = vmatmul.mubr.bf16.gmra.mxu0 %v144
    %v229 = vpop.f32.mrf.mxu0
    %v230 = vadd.f32 %v103, %v229
    %v231 = vpop.f32.mrf.mxu0
    %v232 = vadd.f32 %v107, %v231
    %v233 = vpop.f32.mrf.mxu0
    %v234 = vadd.f32 %v103, %v233
    %v235 = vpop.f32.mrf.mxu0
    %v236 = vadd.f32 %v107, %v235
    %237 = vmatprep.mubr.bf16.mxu0 0
    %238 = vmatmul.mubr.bf16.gmra.mxu0 %v147
    %v239 = vpop.f32.mrf.mxu0
    %v240 = vadd.f32 %v103, %v239
    %v241 = vpop.f32.mrf.mxu0
    %v242 = vadd.f32 %v107, %v241
    %v243 = vpop.f32.mrf.mxu0
    %v244 = vadd.f32 %v103, %v243
    %v245 = vpop.f32.mrf.mxu0
    %v246 = vadd.f32 %v107, %v245
    %247 = vmatprep.mubr.bf16.mxu0 0
    %248 = vmatmul.mubr.bf16.gmra.mxu0 %v150
    %v249 = vpop.f32.mrf.mxu0
    %v250 = vadd.f32 %v103, %v249
    %v251 = vpop.f32.mrf.mxu0
    %v252 = vadd.f32 %v107, %v251
    %v253 = vpop.f32.mrf.mxu0
    %v254 = vadd.f32 %v103, %v253
    %v255 = vpop.f32.mrf.mxu0
    %v256 = vadd.f32 %v107, %v255
    %257 = vmatprep.mubr.bf16.mxu0 0
    %258 = vmatmul.mubr.bf16.gmra.mxu0 %v153
    %v259 = vpop.f32.mrf.mxu0
    %v260 = vadd.f32 %v103, %v259
    %v261 = vpop.f32.mrf.mxu0
    %v262 = vadd.f32 %v107, %v261
    %v263 = vpop.f32.mrf.mxu0
    %v264 = vadd.f32 %v103, %v263
    %v265 = vpop.f32.mrf.mxu0
    %v266 = vadd.f32 %v107, %v265
    %267 = vdwg.mxu0
    %v268 = vmax.f32 %v190, 0.0
    %v269 = vmax.f32 %v192, 0.0
    %v270 = vmax.f32 %v194, 0.0
    %v271 = vmax.f32 %v196, 0.0
    %v272 = vmax.f32 %v200, 0.0
    %v273 = vmax.f32 %v202, 0.0
    %v274 = vmax.f32 %v204, 0.0
    %v275 = vmax.f32 %v206, 0.0
    %v276 = vmax.f32 %v210, 0.0
    %v277 = vmax.f32 %v212, 0.0
    %v278 = vmax.f32 %v214, 0.0
    %v279 = vmax.f32 %v216, 0.0
    %v280 = vmax.f32 %v220, 0.0
    %v281 = vmax.f32 %v222, 0.0
    %v282 = vmax.f32 %v224, 0.0
    %v283 = vmax.f32 %v226, 0.0
    %v284 = vmax.f32 %v230, 0.0
    %v285 = vmax.f32 %v232, 0.0
    %v286 = vmax.f32 %v234, 0.0
    %v287 = vmax.f32 %v236, 0.0
    %v288 = vmax.f32 %v240, 0.0
    %v289 = vmax.f32 %v242, 0.0
    %v290 = vmax.f32 %v244, 0.0
    %v291 = vmax.f32 %v246, 0.0
    %v292 = vmax.f32 %v250, 0.0
    %v293 = vmax.f32 %v252, 0.0
    %v294 = vmax.f32 %v254, 0.0
    %v295 = vmax.f32 %v256, 0.0
    %v296 = vmax.f32 %v260, 0.0
    %v297 = vmax.f32 %v262, 0.0
    %v298 = vmax.f32 %v264, 0.0
    %v299 = vmax.f32 %v266, 0.0
    %v300 = vpack.c.bf16 %v270, %v268
    %v301 = vpack.c.bf16 %v271, %v269
    %v302 = vpack.c.bf16 %v274, %v272
    %v303 = vpack.c.bf16 %v275, %v273
    %v304 = vpack.c.bf16 %v278, %v276
    %v305 = vpack.c.bf16 %v279, %v277
    %v306 = vpack.c.bf16 %v282, %v280
    %v307 = vpack.c.bf16 %v283, %v281
    %v308 = vpack.c.bf16 %v286, %v284
    %v309 = vpack.c.bf16 %v287, %v285
    %v310 = vpack.c.bf16 %v290, %v288
    %v311 = vpack.c.bf16 %v291, %v289
    %v312 = vpack.c.bf16 %v294, %v292
    %v313 = vpack.c.bf16 %v295, %v293
    %v314 = vpack.c.bf16 %v298, %v296
    %v315 = vpack.c.bf16 %v299, %v297
    %v316 = vld [vmem:[#allocation7] sm:$0xff]
    %v317 = vld [vmem:[#allocation7 + $0x8] sm:$0xff]
    %v318 = vld [vmem:[#allocation7 + $0x10] sm:$0xff]
    %v319 = vld [vmem:[#allocation7 + $0x18] sm:$0xff]
    %v320 = vld [vmem:[#allocation7 + $0x20] sm:$0xff]
    %v321 = vld [vmem:[#allocation7 + $0x28] sm:$0xff]
    %v322 = vld [vmem:[#allocation7 + $0x30] sm:$0xff]
    %v323 = vld [vmem:[#allocation7 + $0x38] sm:$0xff]
    %v324 = vld [vmem:[#allocation7 + $0x40] sm:$0xff]
    %v325 = vld [vmem:[#allocation7 + $0x48] sm:$0xff]
    %v326 = vld [vmem:[#allocation7 + $0x50] sm:$0xff]
    %v327 = vld [vmem:[#allocation7 + $0x58] sm:$0xff]
    %v328 = vld [vmem:[#allocation7 + $0x60] sm:$0xff]
    %v329 = vld [vmem:[#allocation7 + $0x68] sm:$0xff]
    %v330 = vld [vmem:[#allocation7 + $0x70] sm:$0xff]
    %v331 = vld [vmem:[#allocation7 + $0x78] sm:$0xff]
    %v332 = vld [vmem:[#allocation7 + $0x80] sm:$0xff]
    %v333 = vld [vmem:[#allocation7 + $0x88] sm:$0xff]
    %v334 = vld [vmem:[#allocation7 + $0x90] sm:$0xff]
    %v335 = vld [vmem:[#allocation7 + $0x98] sm:$0xff]
    %v336 = vld [vmem:[#allocation7 + $0xa0] sm:$0xff]
    %v337 = vld [vmem:[#allocation7 + $0xa8] sm:$0xff]
    %v338 = vld [vmem:[#allocation7 + $0xb0] sm:$0xff]
    %v339 = vld [vmem:[#allocation7 + $0xb8] sm:$0xff]
    %v340 = vld [vmem:[#allocation7 + $0xc0] sm:$0xff]
    %v341 = vld [vmem:[#allocation7 + $0xc8] sm:$0xff]
    %v342 = vld [vmem:[#allocation7 + $0xd0] sm:$0xff]
    %v343 = vld [vmem:[#allocation7 + $0xd8] sm:$0xff]
    %v344 = vld [vmem:[#allocation7 + $0xe0] sm:$0xff]
    %v345 = vld [vmem:[#allocation7 + $0xe8] sm:$0xff]
    %v346 = vld [vmem:[#allocation7 + $0xf0] sm:$0xff]
    %v347 = vld [vmem:[#allocation7 + $0xf8] sm:$0xff]
    %v348 = vld [vmem:[%s4] sm:$0x3]
    %v350 = vlaneseq
    %v351 = vshrl.u32 %v350, 7
    %v352 = vsub.s32 0, %v351
    %v353 = vrot.slane %v348, %v352
    %v354 = vlaneseq
    %v355 = vshrl.u32 %v354, 7
    %v356 = vsub.s32 1, %v355
    %v357 = vrot.slane %v348, %v356
    %v392 = vunpack.c.l.b16 %v316
    %v393 = vunpack.c.h.b16 %v316
    %v394 = vunpack.c.l.b16 %v317
    %v395 = vunpack.c.h.b16 %v317
    %v396 = vunpack.c.l.b16 %v318
    %v397 = vunpack.c.h.b16 %v318
    %v398 = vunpack.c.l.b16 %v319
    %v399 = vunpack.c.h.b16 %v319
    %v400 = vunpack.c.l.b16 %v320
    %v401 = vunpack.c.h.b16 %v320
    %v402 = vunpack.c.l.b16 %v321
    %v403 = vunpack.c.h.b16 %v321
    %v404 = vunpack.c.l.b16 %v322
    %v405 = vunpack.c.h.b16 %v322
    %v406 = vunpack.c.l.b16 %v323
    %v407 = vunpack.c.h.b16 %v323
    %v408 = vunpack.c.l.b16 %v324
    %v409 = vunpack.c.h.b16 %v324
    %v410 = vunpack.c.l.b16 %v325
    %v411 = vunpack.c.h.b16 %v325
    %v412 = vunpack.c.l.b16 %v326
    %v413 = vunpack.c.h.b16 %v326
    %v414 = vunpack.c.l.b16 %v327
    %v415 = vunpack.c.h.b16 %v327
    %v416 = vunpack.c.l.b16 %v328
    %v417 = vunpack.c.h.b16 %v328
    %v418 = vunpack.c.l.b16 %v329
    %v419 = vunpack.c.h.b16 %v329
    %v420 = vunpack.c.l.b16 %v330
    %v421 = vunpack.c.h.b16 %v330
    %v422 = vunpack.c.l.b16 %v331
    %v423 = vunpack.c.h.b16 %v331
    %v424 = vunpack.c.l.b16 %v332
    %v425 = vunpack.c.h.b16 %v332
    %v426 = vunpack.c.l.b16 %v333
    %v427 = vunpack.c.h.b16 %v333
    %v428 = vunpack.c.l.b16 %v334
    %v429 = vunpack.c.h.b16 %v334
    %v430 = vunpack.c.l.b16 %v335
    %v431 = vunpack.c.h.b16 %v335
    %v432 = vunpack.c.l.b16 %v336
    %v433 = vunpack.c.h.b16 %v336
    %v434 = vunpack.c.l.b16 %v337
    %v435 = vunpack.c.h.b16 %v337
    %v436 = vunpack.c.l.b16 %v338
    %v437 = vunpack.c.h.b16 %v338
    %v438 = vunpack.c.l.b16 %v339
    %v439 = vunpack.c.h.b16 %v339
    %v440 = vunpack.c.l.b16 %v340
    %v441 = vunpack.c.h.b16 %v340
    %v442 = vunpack.c.l.b16 %v341
    %v443 = vunpack.c.h.b16 %v341
    %v444 = vunpack.c.l.b16 %v342
    %v445 = vunpack.c.h.b16 %v342
    %v446 = vunpack.c.l.b16 %v343
    %v447 = vunpack.c.h.b16 %v343
    %v448 = vunpack.c.l.b16 %v344
    %v449 = vunpack.c.h.b16 %v344
    %v450 = vunpack.c.l.b16 %v345
    %v451 = vunpack.c.h.b16 %v345
    %v452 = vunpack.c.l.b16 %v346
    %v453 = vunpack.c.h.b16 %v346
    %v454 = vunpack.c.l.b16 %v347
    %v455 = vunpack.c.h.b16 %v347
    %v456 = vpack.c.b16 %v394, %v392
    %v457 = vpack.c.b16 %v395, %v393
    %v458 = vpack.c.b16 %v398, %v396
    %v459 = vpack.c.b16 %v399, %v397
    %v460 = vpack.c.b16 %v402, %v400
    %v461 = vpack.c.b16 %v403, %v401
    %v462 = vpack.c.b16 %v406, %v404
    %v463 = vpack.c.b16 %v407, %v405
    %v464 = vpack.c.b16 %v410, %v408
    %v465 = vpack.c.b16 %v411, %v409
    %v466 = vpack.c.b16 %v414, %v412
    %v467 = vpack.c.b16 %v415, %v413
    %v468 = vpack.c.b16 %v418, %v416
    %v469 = vpack.c.b16 %v419, %v417
    %v470 = vpack.c.b16 %v422, %v420
    %v471 = vpack.c.b16 %v423, %v421
    %v472 = vpack.c.b16 %v426, %v424
    %v473 = vpack.c.b16 %v427, %v425
    %v474 = vpack.c.b16 %v430, %v428
    %v475 = vpack.c.b16 %v431, %v429
    %v476 = vpack.c.b16 %v434, %v432
    %v477 = vpack.c.b16 %v435, %v433
    %v478 = vpack.c.b16 %v438, %v436
    %v479 = vpack.c.b16 %v439, %v437
    %v480 = vpack.c.b16 %v442, %v440
    %v481 = vpack.c.b16 %v443, %v441
    %v482 = vpack.c.b16 %v446, %v444
    %v483 = vpack.c.b16 %v447, %v445
    %v484 = vpack.c.b16 %v450, %v448
    %v485 = vpack.c.b16 %v451, %v449
    %v486 = vpack.c.b16 %v454, %v452
    %v487 = vpack.c.b16 %v455, %v453
    %520 = vmatprep.subr.bf16.mxu0 %v471
    %521 = vmatpush1.bf16.msra.mxu0 %v470
    %522 = vmatprep.subr.bf16.mxu0 %v469
    %523 = vmatpush1.bf16.msra.mxu0 %v468
    %524 = vmatprep.subr.bf16.mxu0 %v467
    %525 = vmatpush1.bf16.msra.mxu0 %v466
    %526 = vmatprep.subr.bf16.mxu0 %v465
    %527 = vmatpush1.bf16.msra.mxu0 %v464
    %528 = vmatprep.subr.bf16.mxu0 %v463
    %529 = vmatpush1.bf16.msra.mxu0 %v462
    %530 = vmatprep.subr.bf16.mxu0 %v461
    %531 = vmatpush1.bf16.msra.mxu0 %v460
    %532 = vmatprep.subr.bf16.mxu0 %v459
    %533 = vmatpush1.bf16.msra.mxu0 %v458
    %534 = vmatprep.subr.bf16.mxu0 %v457
    %535 = vmatpush1.bf16.msra.mxu0 %v456
    %536 = vmatprep.subr.bf16.mxu0 %v487
    %537 = vmatpush2.bf16.msra.mxu0 %v486
    %538 = vmatprep.subr.bf16.mxu0 %v485
    %539 = vmatpush2.bf16.msra.mxu0 %v484
    %540 = vmatprep.subr.bf16.mxu0 %v483
    %541 = vmatpush2.bf16.msra.mxu0 %v482
    %542 = vmatprep.subr.bf16.mxu0 %v481
    %543 = vmatpush2.bf16.msra.mxu0 %v480
    %544 = vmatprep.subr.bf16.mxu0 %v479
    %545 = vmatpush2.bf16.msra.mxu0 %v478
    %546 = vmatprep.subr.bf16.mxu0 %v477
    %547 = vmatpush2.bf16.msra.mxu0 %v476
    %548 = vmatprep.subr.bf16.mxu0 %v475
    %549 = vmatpush2.bf16.msra.mxu0 %v474
    %550 = vmatprep.subr.bf16.mxu0 %v473
    %551 = vmatpush2.bf16.msra.mxu0 %v472
    %552 = vmatprep.mubr.bf16.mxu0 %v301
    %553 = vmatmul.mubr.bf16.gmra.mxu0 %v300
    %v554 = vpop.f32.mrf.mxu0
    %v555 = vadd.f32 %v353, %v554
    %v556 = vpop.f32.mrf.mxu0
    %v557 = vadd.f32 %v357, %v556
    %v558 = vpop.f32.mrf.mxu0
    %v559 = vadd.f32 %v353, %v558
    %v560 = vpop.f32.mrf.mxu0
    %v561 = vadd.f32 %v357, %v560
    %562 = vmatprep.mubr.bf16.mxu0 %v303
    %563 = vmatmul.mubr.bf16.gmra.mxu0 %v302
    %v564 = vpop.f32.mrf.mxu0
    %v565 = vadd.f32 %v353, %v564
    %v566 = vpop.f32.mrf.mxu0
    %v567 = vadd.f32 %v357, %v566
    %v568 = vpop.f32.mrf.mxu0
    %v569 = vadd.f32 %v353, %v568
    %v570 = vpop.f32.mrf.mxu0
    %v571 = vadd.f32 %v357, %v570
    %572 = vmatprep.mubr.bf16.mxu0 %v305
    %573 = vmatmul.mubr.bf16.gmra.mxu0 %v304
    %v574 = vpop.f32.mrf.mxu0
    %v575 = vadd.f32 %v353, %v574
    %v576 = vpop.f32.mrf.mxu0
    %v577 = vadd.f32 %v357, %v576
    %v578 = vpop.f32.mrf.mxu0
    %v579 = vadd.f32 %v353, %v578
    %v580 = vpop.f32.mrf.mxu0
    %v581 = vadd.f32 %v357, %v580
    %582 = vmatprep.mubr.bf16.mxu0 %v307
    %583 = vmatmul.mubr.bf16.gmra.mxu0 %v306
    %v584 = vpop.f32.mrf.mxu0
    %v585 = vadd.f32 %v353, %v584
    %v586 = vpop.f32.mrf.mxu0
    %v587 = vadd.f32 %v357, %v586
    %v588 = vpop.f32.mrf.mxu0
    %v589 = vadd.f32 %v353, %v588
    %v590 = vpop.f32.mrf.mxu0
    %v591 = vadd.f32 %v357, %v590
    %592 = vmatprep.mubr.bf16.mxu0 %v309
    %593 = vmatmul.mubr.bf16.gmra.mxu0 %v308
    %v594 = vpop.f32.mrf.mxu0
    %v595 = vadd.f32 %v353, %v594
    %v596 = vpop.f32.mrf.mxu0
    %v597 = vadd.f32 %v357, %v596
    %v598 = vpop.f32.mrf.mxu0
    %v599 = vadd.f32 %v353, %v598
    %v600 = vpop.f32.mrf.mxu0
    %v601 = vadd.f32 %v357, %v600
    %602 = vmatprep.mubr.bf16.mxu0 %v311
    %603 = vmatmul.mubr.bf16.gmra.mxu0 %v310
    %v604 = vpop.f32.mrf.mxu0
    %v605 = vadd.f32 %v353, %v604
    %v606 = vpop.f32.mrf.mxu0
    %v607 = vadd.f32 %v357, %v606
    %v608 = vpop.f32.mrf.mxu0
    %v609 = vadd.f32 %v353, %v608
    %v610 = vpop.f32.mrf.mxu0
    %v611 = vadd.f32 %v357, %v610
    %612 = vmatprep.mubr.bf16.mxu0 %v313
    %613 = vmatmul.mubr.bf16.gmra.mxu0 %v312
    %v614 = vpop.f32.mrf.mxu0
    %v615 = vadd.f32 %v353, %v614
    %v616 = vpop.f32.mrf.mxu0
    %v617 = vadd.f32 %v357, %v616
    %v618 = vpop.f32.mrf.mxu0
    %v619 = vadd.f32 %v353, %v618
    %v620 = vpop.f32.mrf.mxu0
    %v621 = vadd.f32 %v357, %v620
    %622 = vmatprep.mubr.bf16.mxu0 %v315
    %623 = vmatmul.mubr.bf16.gmra.mxu0 %v314
    %v624 = vpop.f32.mrf.mxu0
    %v625 = vadd.f32 %v353, %v624
    %v626 = vpop.f32.mrf.mxu0
    %v627 = vadd.f32 %v357, %v626
    %v628 = vpop.f32.mrf.mxu0
    %v629 = vadd.f32 %v353, %v628
    %v630 = vpop.f32.mrf.mxu0
    %v631 = vadd.f32 %v357, %v630
    %632 = vdwg.mxu0
    %v633 = vmax.f32 %v555, 0.0
    %v634 = vmax.f32 %v557, 0.0
    %v635 = vmax.f32 %v559, 0.0
    %v636 = vmax.f32 %v561, 0.0
    %v637 = vmax.f32 %v565, 0.0
    %v638 = vmax.f32 %v567, 0.0
    %v639 = vmax.f32 %v569, 0.0
    %v640 = vmax.f32 %v571, 0.0
    %v641 = vmax.f32 %v575, 0.0
    %v642 = vmax.f32 %v577, 0.0
    %v643 = vmax.f32 %v579, 0.0
    %v644 = vmax.f32 %v581, 0.0
    %v645 = vmax.f32 %v585, 0.0
    %v646 = vmax.f32 %v587, 0.0
    %v647 = vmax.f32 %v589, 0.0
    %v648 = vmax.f32 %v591, 0.0
    %v649 = vmax.f32 %v595, 0.0
    %v650 = vmax.f32 %v597, 0.0
    %v651 = vmax.f32 %v599, 0.0
    %v652 = vmax.f32 %v601, 0.0
    %v653 = vmax.f32 %v605, 0.0
    %v654 = vmax.f32 %v607, 0.0
    %v655 = vmax.f32 %v609, 0.0
    %v656 = vmax.f32 %v611, 0.0
    %v657 = vmax.f32 %v615, 0.0
    %v658 = vmax.f32 %v617, 0.0
    %v659 = vmax.f32 %v619, 0.0
    %v660 = vmax.f32 %v621, 0.0
    %v661 = vmax.f32 %v625, 0.0
    %v662 = vmax.f32 %v627, 0.0
    %v663 = vmax.f32 %v629, 0.0
    %v664 = vmax.f32 %v631, 0.0
    %v665 = vld [vmem:[%s5] sm:$0x3]
    %v666 = vld [vmem:[#allocation2] sm:$0x1]
    %668 = vset.pattern.permute.xlu0 0
    %669 = vperm.xlu0 %668, %v666
    %v670 = vpop.permute.xlu0 %669
    %v672 = vlaneseq
    %v673 = vshrl.u32 %v672, 7
    %v674 = vsub.s32 0, %v673
    %v675 = vrot.slane %v670, %v674
    %v677 = vlaneseq
    %v678 = vshrl.u32 %v677, 7
    %v679 = vsub.s32 0, %v678
    %v680 = vrot.slane %v665, %v679
    %v681 = vlaneseq
    %v682 = vshrl.u32 %v681, 7
    %v683 = vsub.s32 1, %v682
    %v684 = vrot.slane %v665, %v683
    %687 = vmatprep.subr.mxu0 %v664
    %688 = vmatpush1.xpose.msra.mxu0 %v663
    %689 = vmatprep.subr.mxu0 %v662
    %690 = vmatpush1.xpose.msra.mxu0 %v661
    %691 = vmatprep.subr.mxu0 %v660
    %692 = vmatpush1.xpose.msra.mxu0 %v659
    %693 = vmatprep.subr.mxu0 %v658
    %694 = vmatpush1.xpose.msra.mxu0 %v657
    %695 = vmatprep.subr.mxu0 %v656
    %696 = vmatpush1.xpose.msra.mxu0 %v655
    %697 = vmatprep.subr.mxu0 %v654
    %698 = vmatpush1.xpose.msra.mxu0 %v653
    %699 = vmatprep.subr.mxu0 %v652
    %700 = vmatpush1.xpose.msra.mxu0 %v651
    %701 = vmatprep.subr.mxu0 %v650
    %702 = vmatpush1.xpose.msra.mxu0 %v649
    %703 = vmatprep.subr.mxu0 %v648
    %704 = vmatpush1.xpose.msra.mxu0 %v647
    %705 = vmatprep.subr.mxu0 %v646
    %706 = vmatpush1.xpose.msra.mxu0 %v645
    %707 = vmatprep.subr.mxu0 %v644
    %708 = vmatpush1.xpose.msra.mxu0 %v643
    %709 = vmatprep.subr.mxu0 %v642
    %710 = vmatpush1.xpose.msra.mxu0 %v641
    %711 = vmatprep.subr.mxu0 %v640
    %712 = vmatpush1.xpose.msra.mxu0 %v639
    %713 = vmatprep.subr.mxu0 %v638
    %714 = vmatpush1.xpose.msra.mxu0 %v637
    %715 = vmatprep.subr.mxu0 %v636
    %716 = vmatpush1.xpose.msra.mxu0 %v635
    %717 = vmatprep.subr.mxu0 %v634
    %718 = vmatpush1.xpose.msra.mxu0 %v633
    %719 = vmatprep.subr.mxu0 0.0
    %720 = vmatpush2.xpose.msra.mxu0 0.0
    %721 = vmatprep.subr.mxu0 0.0
    %722 = vmatpush2.xpose.msra.mxu0 0.0
    %723 = vmatprep.subr.mxu0 0.0
    %724 = vmatpush2.xpose.msra.mxu0 0.0
    %725 = vmatprep.subr.mxu0 0.0
    %726 = vmatpush2.xpose.msra.mxu0 0.0
    %727 = vmatprep.subr.mxu0 0.0
    %728 = vmatpush2.xpose.msra.mxu0 0.0
    %729 = vmatprep.subr.mxu0 0.0
    %730 = vmatpush2.xpose.msra.mxu0 0.0
    %731 = vmatprep.subr.mxu0 0.0
    %732 = vmatpush2.xpose.msra.mxu0 0.0
    %733 = vmatprep.subr.mxu0 0.0
    %734 = vmatpush2.xpose.msra.mxu0 0.0
    %735 = vmatprep.subr.mxu0 0.0
    %736 = vmatpush2.xpose.msra.mxu0 0.0
    %737 = vmatprep.subr.mxu0 0.0
    %738 = vmatpush2.xpose.msra.mxu0 0.0
    %739 = vmatprep.subr.mxu0 0.0
    %740 = vmatpush2.xpose.msra.mxu0 0.0
    %741 = vmatprep.subr.mxu0 0.0
    %742 = vmatpush2.xpose.msra.mxu0 0.0
    %743 = vmatprep.subr.mxu0 0.0
    %744 = vmatpush2.xpose.msra.mxu0 0.0
    %745 = vmatprep.subr.mxu0 0.0
    %746 = vmatpush2.xpose.msra.mxu0 0.0
    %747 = vmatprep.subr.mxu0 0.0
    %748 = vmatpush2.xpose.msra.mxu0 0.0
    %749 = vmatprep.subr.mxu0 0.0
    %750 = vmatpush2.xpose.msra.mxu0 0.0
    %751 = vmatprep.mubr.f32.mxu0 %v684
    %752 = vmatmul.mubr.f32.gmra.mxu0 %v680
    %v753 = vpop.f32.mrf.mxu0
    %v754 = vadd.f32 %v675, %v753
    %v755 = vpop.f32.mrf.mxu0
    %756 = vdwg.mxu0
    %v757 = vxor.u32 %v754, 2147483648
    %v758 = vmul.f32 %v757, 1.442695
    %v759 = vpow.pop %v758
    %v760 = vadd.f32 %v759, 1.0
    %v761 = vrcp.pop %v760
    %v762 = vmul.f32 1.0, %v761
    %763 = vst [vmem:[%s7] sm:$0x1] %v762
    // Predicated region
    $region42: #{net_forward.1} parent=1 // pred_check
      _
    $region43: #{net_forward.1} parent=1 // pred_check_branch
      %765 = sbr.rel (0) target = $region45
    $region44: #{net_forward.1} parent=1 // pred_region
      _
    $region45: #{net_forward.1} parent=1 // pred_fallthru
      _
    // Predicated region
    $region46: #{net_forward.1} parent=1 // pred_check
      _
    $region47: #{net_forward.1} parent=1 // pred_check_branch
      %767 = sbr.rel (0) target = $region49
    $region48: #{net_forward.1} parent=1 // pred_region
      _
    $region49: #{net_forward.1} parent=1 // pred_fallthru
      _
    %768 = vsyncpa [#allocation4], 1
    %769 = vsyncpa [#allocation6], 1

</llo_original>
